<compile_context>
chip_gen: v5e
topology: v5e:2x2
jax: 0.10.0
libtpu: 0.0.40
codegen_flags: <defaults>
</compile_context>

<pallas_src>
import jax
import jax.numpy as jnp
import numpy as np
from jax import lax
from jax.experimental import pallas as pl
from jax.experimental.pallas import tpu as pltpu


def _biaffine_kernel(wd_ref, we_ref, b_ref, uf_ref, d_ref, e_ref, md_ref, me_ref, out_ref):
    d = d_ref[0]          # (Ld, n_dec)
    e = e_ref[0]          # (Le, n_enc)
    md = md_ref[0]        # (Ld, 1)  f32 0/1 mask (column)
    me = me_ref[0]        # (1, Le)  f32 0/1 mask (row)

    f32 = jnp.float32
    contract_last = (((1,), (1,)), ((), ()))   # contract last dim of both operands

    # Affine terms for ALL labels, once per batch step (bias folded in).
    # aff_d[i, l] = W_d[l] . d[i]  + b[l]      -> (Ld, L)
    # aff_e[l, j] = W_e[l] . e[j]              -> (L, Le)
    aff_d = lax.dot_general(d, wd_ref[...], contract_last,
                            preferred_element_type=f32) + b_ref[...]
    aff_e = lax.dot_general(we_ref[...], e, contract_last,
                            preferred_element_type=f32)

    # Bilinear term, first contraction as ONE wide MXU matmul over all labels:
    # du[i, l*n_enc + k] = sum_d d[i, d] * U[l, d, k]   -> (Ld, L * n_enc)
    du = jnp.dot(d, uf_ref[...], preferred_element_type=f32)

    n_labels = aff_e.shape[0]
    n_enc = e.shape[1]
    for l in range(n_labels):  # static unroll over labels (compile-time constant)
        du_l = du[:, l * n_enc:(l + 1) * n_enc]                       # (Ld, n_enc)
        bil = lax.dot_general(du_l, e, contract_last,
                              preferred_element_type=f32)             # (Ld, Le)
        out = bil + aff_d[:, l:l + 1] + aff_e[l:l + 1, :]             # (Ld, Le)
        out = out * md * me
        out_ref[0, l] = out.astype(out_ref.dtype)


def biaffine_pallas(W_d, W_e, b, U, input_d, input_e, mask_d=None, mask_e=None,
                    compute_dtype=None):
    """Forward pass of BiAffine (biaffine=True path) on TPU via Pallas."""
    B, Ld, n_dec = input_d.shape
    Be, Le, n_enc = input_e.shape
    assert B == Be, "batch sizes of encoder and decoder must be equal"
    L = W_d.shape[0]
    out_dtype = input_d.dtype

    # Label-flattened U: (n_dec, L*n_enc), column block l is U[l].
    U_flat = jnp.transpose(U, (1, 0, 2)).reshape(n_dec, L * n_enc)
    b_row = b.reshape(1, L).astype(jnp.float32)

    if compute_dtype is not None:  # e.g. jnp.bfloat16: halves DMA/VMEM, f32 accumulation
        input_d = input_d.astype(compute_dtype)
        input_e = input_e.astype(compute_dtype)
        U_flat = U_flat.astype(compute_dtype)
        W_d = W_d.astype(compute_dtype)
        W_e = W_e.astype(compute_dtype)

    if mask_d is None:
        mask_d = jnp.ones((B, Ld), jnp.float32)
    if mask_e is None:
        mask_e = jnp.ones((B, Le), jnp.float32)
    md = mask_d.reshape(B, Ld, 1).astype(jnp.float32)
    me = mask_e.reshape(B, 1, Le).astype(jnp.float32)

    return pl.pallas_call(
        _biaffine_kernel,
        out_shape=jax.ShapeDtypeStruct((B, L, Ld, Le), out_dtype),
        grid_spec=pltpu.PrefetchScalarGridSpec(
            num_scalar_prefetch=0,
            grid=(B,),
            in_specs=[
                # Parameters: constant index maps -> DMA'd once, resident across grid.
                pl.BlockSpec((L, n_dec), lambda bi: (0, 0)),             # W_d
                pl.BlockSpec((L, n_enc), lambda bi: (0, 0)),             # W_e
                pl.BlockSpec((1, L), lambda bi: (0, 0)),                 # b (row)
                pl.BlockSpec((n_dec, L * n_enc), lambda bi: (0, 0)),     # U_flat
                # Per-batch activations / masks.
                pl.BlockSpec((1, Ld, n_dec), lambda bi: (bi, 0, 0)),     # input_d
                pl.BlockSpec((1, Le, n_enc), lambda bi: (bi, 0, 0)),     # input_e
                pl.BlockSpec((1, Ld, 1), lambda bi: (bi, 0, 0)),         # mask_d
                pl.BlockSpec((1, 1, Le), lambda bi: (bi, 0, 0)),         # mask_e
            ],
            out_specs=pl.BlockSpec((1, L, Ld, Le), lambda bi: (bi, 0, 0, 0)),
        ),
        compiler_params=pltpu.CompilerParams(
            dimension_semantics=("parallel",)),
    )(W_d, W_e, b_row, U_flat, input_d, input_e, md, me)
    # TODO(synk): only the biaffine=True branch is implemented (biaffine=False path unused here).


def biaffine_ref(W_d, W_e, b, U, input_d, input_e, mask_d, mask_e):
    # Pure-JAX reference mirroring the PyTorch forward (biaffine=True path).
    out_d = jnp.einsum('ld,bnd->bln', W_d, input_d)[..., None]        # (B,L,Ld,1)
    out_e = jnp.einsum('le,bme->blm', W_e, input_e)[:, :, None, :]    # (B,L,1,Le)
    bil = jnp.einsum('bnd,lde,bme->blnm', input_d, U, input_e)        # (B,L,Ld,Le)
    out = bil + out_d + out_e + b[None]
    out = out * mask_d[:, None, :, None] * mask_e[:, None, None, :]
    return out


def _xavier_uniform(key, shape):
    # PyTorch xavier_uniform_: fan_in = shape[1]*prod(shape[2:]), fan_out = shape[0]*prod(shape[2:])
    recv = int(np.prod(shape[2:])) if len(shape) > 2 else 1
    fan_in = shape[1] * recv
    fan_out = shape[0] * recv
    bound = float(np.sqrt(6.0 / (fan_in + fan_out)))
    return jax.random.uniform(key, shape, jnp.float32, -bound, bound)


if __name__ == "__main__":
    # Small shapes consistent with the module.
    B, Ld, Le = 2, 8, 16
    n_dec, n_enc, n_labels = 32, 32, 4

    key = jax.random.PRNGKey(0)
    k_wd, k_we, k_u, k_d, k_e, k_md, k_me = jax.random.split(key, 7)

    # Deterministic parameter init (mirrors reset_parameters: xavier for W_d/W_e/U, zeros for b).
    W_d = _xavier_uniform(k_wd, (n_labels, n_dec))
    W_e = _xavier_uniform(k_we, (n_labels, n_enc))
    b = jnp.zeros((n_labels, 1, 1), jnp.float32)
    U = _xavier_uniform(k_u, (n_labels, n_dec, n_enc))

    input_d = jax.random.normal(k_d, (B, Ld, n_dec), jnp.float32)
    input_e = jax.random.normal(k_e, (B, Le, n_enc), jnp.float32)
    mask_d = (jax.random.uniform(k_md, (B, Ld)) > 0.2).astype(jnp.float32)
    mask_e = (jax.random.uniform(k_me, (B, Le)) > 0.2).astype(jnp.float32)

    out = biaffine_pallas(W_d, W_e, b, U, input_d, input_e, mask_d, mask_e)
    out = jax.block_until_ready(out)

    ref = biaffine_ref(W_d, W_e, b, U, input_d, input_e, mask_d, mask_e)
    ref = jax.block_until_ready(ref)

    assert out.shape == (B, n_labels, Ld, Le), out.shape
    np.testing.assert_allclose(np.asarray(out), np.asarray(ref), rtol=1e-3, atol=1e-3)
    print("KERNEL_OK")
</pallas_src>

<mosaic_0001>
module attributes {stable_mosaic.version = 11 : i64} {
  func.func @_biaffine_kernel(%arg0: i32, %arg1: memref<4x32xf32, #tpu.memory_space<vmem>>, %arg2: memref<4x32xf32, #tpu.memory_space<vmem>>, %arg3: memref<1x4xf32, #tpu.memory_space<vmem>>, %arg4: memref<32x128xf32, #tpu.memory_space<vmem>>, %arg5: memref<1x8x32xf32, #tpu.memory_space<vmem>>, %arg6: memref<1x16x32xf32, #tpu.memory_space<vmem>>, %arg7: memref<1x8x1xf32, #tpu.memory_space<vmem>>, %arg8: memref<1x1x16xf32, #tpu.memory_space<vmem>>, %arg9: memref<1x4x8x16xf32, #tpu.memory_space<vmem>>) attributes {dimension_semantics = [#tpu.dimension_semantics<parallel>], iteration_bounds = array<i64: 2>, scalar_prefetch = 0 : i64, scratch_operands = 0 : i64, tpu.core_type = #tpu.core_type<tc>, window_params = [{pipeline_mode = #tpu.pipeline_mode<synchronous>, transform_indices = @transform_0, window_bounds = array<i64: 4, 32>}, {pipeline_mode = #tpu.pipeline_mode<synchronous>, transform_indices = @transform_1, window_bounds = array<i64: 4, 32>}, {pipeline_mode = #tpu.pipeline_mode<synchronous>, transform_indices = @transform_2, window_bounds = array<i64: 1, 4>}, {pipeline_mode = #tpu.pipeline_mode<synchronous>, transform_indices = @transform_3, window_bounds = array<i64: 32, 128>}, {transform_indices = @transform_4, window_bounds = array<i64: 1, 8, 32>}, {transform_indices = @transform_5, window_bounds = array<i64: 1, 16, 32>}, {transform_indices = @transform_6, window_bounds = array<i64: 1, 8, 1>}, {transform_indices = @transform_7, window_bounds = array<i64: 1, 1, 16>}, {transform_indices = @transform_8, window_bounds = array<i64: 1, 4, 8, 16>}]} {
    %c0 = arith.constant 0 : index
    %c0_0 = arith.constant 0 : index
    %c0_1 = arith.constant 0 : index
    %0 = vector.load %arg5[%c0, %c0_0, %c0_1] : memref<1x8x32xf32, #tpu.memory_space<vmem>>, vector<1x8x32xf32>
    %1 = vector.shape_cast %0 : vector<1x8x32xf32> to vector<8x32xf32>
    %c0_2 = arith.constant 0 : index
    %c0_3 = arith.constant 0 : index
    %c0_4 = arith.constant 0 : index
    %2 = vector.load %arg6[%c0_2, %c0_3, %c0_4] : memref<1x16x32xf32, #tpu.memory_space<vmem>>, vector<1x16x32xf32>
    %3 = vector.shape_cast %2 : vector<1x16x32xf32> to vector<16x32xf32>
    %c0_5 = arith.constant 0 : index
    %c0_6 = arith.constant 0 : index
    %c0_7 = arith.constant 0 : index
    %4 = vector.load %arg7[%c0_5, %c0_6, %c0_7] : memref<1x8x1xf32, #tpu.memory_space<vmem>>, vector<1x8x1xf32>
    %5 = vector.shape_cast %4 : vector<1x8x1xf32> to vector<8x1xf32>
    %c0_8 = arith.constant 0 : index
    %c0_9 = arith.constant 0 : index
    %c0_10 = arith.constant 0 : index
    %6 = vector.load %arg8[%c0_8, %c0_9, %c0_10] : memref<1x1x16xf32, #tpu.memory_space<vmem>>, vector<1x1x16xf32>
    %7 = vector.shape_cast %6 : vector<1x1x16xf32> to vector<1x16xf32>
    %c0_11 = arith.constant 0 : index
    %c0_12 = arith.constant 0 : index
    %8 = vector.load %arg1[%c0_11, %c0_12] : memref<4x32xf32, #tpu.memory_space<vmem>>, vector<4x32xf32>
    %cst = arith.constant dense<0.000000e+00> : vector<8x4xf32>
    %9 = tpu.matmul %1, %8, %cst {dimension_numbers = #tpu.dot_dimension_numbers<[1], [1], [0], [0], [0, 0, 1, 0], [], []>} : vector<8x32xf32>, vector<4x32xf32>, vector<8x4xf32> -> vector<8x4xf32>
    %c0_13 = arith.constant 0 : index
    %c0_14 = arith.constant 0 : index
    %10 = vector.load %arg3[%c0_13, %c0_14] : memref<1x4xf32, #tpu.memory_space<vmem>>, vector<1x4xf32>
    %11 = vector.broadcast %10 : vector<1x4xf32> to vector<8x4xf32>
    %12 = arith.addf %9, %11 : vector<8x4xf32>
    %c0_15 = arith.constant 0 : index
    %c0_16 = arith.constant 0 : index
    %13 = vector.load %arg2[%c0_15, %c0_16] : memref<4x32xf32, #tpu.memory_space<vmem>>, vector<4x32xf32>
    %cst_17 = arith.constant dense<0.000000e+00> : vector<4x16xf32>
    %14 = tpu.matmul %13, %3, %cst_17 {dimension_numbers = #tpu.dot_dimension_numbers<[1], [1], [0], [0], [0, 0, 1, 0], [], []>} : vector<4x32xf32>, vector<16x32xf32>, vector<4x16xf32> -> vector<4x16xf32>
    %c0_18 = arith.constant 0 : index
    %c0_19 = arith.constant 0 : index
    %15 = vector.load %arg4[%c0_18, %c0_19] : memref<32x128xf32, #tpu.memory_space<vmem>>, vector<32x128xf32>
    %cst_20 = arith.constant dense<0.000000e+00> : vector<8x128xf32>
    %16 = tpu.matmul %1, %15, %cst_20 {dimension_numbers = #tpu.dot_dimension_numbers<[1], [0], [0], [1], [0, 0, 1, 1], [], []>} : vector<8x32xf32>, vector<32x128xf32>, vector<8x128xf32> -> vector<8x128xf32>
    %17 = vector.extract_strided_slice %16 {offsets = [0, 0], sizes = [8, 32], strides = [1, 1]} : vector<8x128xf32> to vector<8x32xf32>
    %cst_21 = arith.constant dense<0.000000e+00> : vector<8x16xf32>
    %18 = tpu.matmul %17, %3, %cst_21 {dimension_numbers = #tpu.dot_dimension_numbers<[1], [1], [0], [0], [0, 0, 1, 0], [], []>} : vector<8x32xf32>, vector<16x32xf32>, vector<8x16xf32> -> vector<8x16xf32>
    %19 = vector.extract_strided_slice %12 {offsets = [0, 0], sizes = [8, 1], strides = [1, 1]} : vector<8x4xf32> to vector<8x1xf32>
    %20 = vector.broadcast %19 : vector<8x1xf32> to vector<8x16xf32>
    %21 = arith.addf %18, %20 : vector<8x16xf32>
    %22 = vector.extract_strided_slice %14 {offsets = [0, 0], sizes = [1, 16], strides = [1, 1]} : vector<4x16xf32> to vector<1x16xf32>
    %23 = vector.broadcast %22 : vector<1x16xf32> to vector<8x16xf32>
    %24 = arith.addf %21, %23 : vector<8x16xf32>
    %25 = vector.broadcast %5 : vector<8x1xf32> to vector<8x16xf32>
    %26 = arith.mulf %24, %25 : vector<8x16xf32>
    %27 = vector.broadcast %7 : vector<1x16xf32> to vector<8x16xf32>
    %28 = arith.mulf %26, %27 : vector<8x16xf32>
    %c0_22 = arith.constant 0 : index
    %c0_23 = arith.constant 0 : index
    %c0_24 = arith.constant 0 : index
    %c0_25 = arith.constant 0 : index
    %29 = vector.load %arg9[%c0_22, %c0_23, %c0_24, %c0_25] : memref<1x4x8x16xf32, #tpu.memory_space<vmem>>, vector<1x1x8x16xf32>
    %30 = vector.shape_cast %29 : vector<1x1x8x16xf32> to vector<8x16xf32>
    %31 = vector.shape_cast %28 : vector<8x16xf32> to vector<1x1x8x16xf32>
    tpu.vector_store %arg9[%c0_22, %c0_23, %c0_24, %c0_25], %31 {strides = array<i32>} : memref<1x4x8x16xf32, #tpu.memory_space<vmem>>, vector<1x1x8x16xf32>,
    %32 = vector.extract_strided_slice %16 {offsets = [0, 32], sizes = [8, 32], strides = [1, 1]} : vector<8x128xf32> to vector<8x32xf32>
    %cst_26 = arith.constant dense<0.000000e+00> : vector<8x16xf32>
    %33 = tpu.matmul %32, %3, %cst_26 {dimension_numbers = #tpu.dot_dimension_numbers<[1], [1], [0], [0], [0, 0, 1, 0], [], []>} : vector<8x32xf32>, vector<16x32xf32>, vector<8x16xf32> -> vector<8x16xf32>
    %34 = vector.extract_strided_slice %12 {offsets = [0, 1], sizes = [8, 1], strides = [1, 1]} : vector<8x4xf32> to vector<8x1xf32>
    %35 = vector.broadcast %34 : vector<8x1xf32> to vector<8x16xf32>
    %36 = arith.addf %33, %35 : vector<8x16xf32>
    %37 = vector.extract_strided_slice %14 {offsets = [1, 0], sizes = [1, 16], strides = [1, 1]} : vector<4x16xf32> to vector<1x16xf32>
    %38 = vector.broadcast %37 : vector<1x16xf32> to vector<8x16xf32>
    %39 = arith.addf %36, %38 : vector<8x16xf32>
    %40 = vector.broadcast %5 : vector<8x1xf32> to vector<8x16xf32>
    %41 = arith.mulf %39, %40 : vector<8x16xf32>
    %42 = vector.broadcast %7 : vector<1x16xf32> to vector<8x16xf32>
    %43 = arith.mulf %41, %42 : vector<8x16xf32>
    %c0_27 = arith.constant 0 : index
    %c1 = arith.constant 1 : index
    %c0_28 = arith.constant 0 : index
    %c0_29 = arith.constant 0 : index
    %44 = vector.load %arg9[%c0_27, %c1, %c0_28, %c0_29] : memref<1x4x8x16xf32, #tpu.memory_space<vmem>>, vector<1x1x8x16xf32>
    %45 = vector.shape_cast %44 : vector<1x1x8x16xf32> to vector<8x16xf32>
    %46 = vector.shape_cast %43 : vector<8x16xf32> to vector<1x1x8x16xf32>
    tpu.vector_store %arg9[%c0_27, %c1, %c0_28, %c0_29], %46 {strides = array<i32>} : memref<1x4x8x16xf32, #tpu.memory_space<vmem>>, vector<1x1x8x16xf32>,
    %47 = vector.extract_strided_slice %16 {offsets = [0, 64], sizes = [8, 32], strides = [1, 1]} : vector<8x128xf32> to vector<8x32xf32>
    %cst_30 = arith.constant dense<0.000000e+00> : vector<8x16xf32>
    %48 = tpu.matmul %47, %3, %cst_30 {dimension_numbers = #tpu.dot_dimension_numbers<[1], [1], [0], [0], [0, 0, 1, 0], [], []>} : vector<8x32xf32>, vector<16x32xf32>, vector<8x16xf32> -> vector<8x16xf32>
    %49 = vector.extract_strided_slice %12 {offsets = [0, 2], sizes = [8, 1], strides = [1, 1]} : vector<8x4xf32> to vector<8x1xf32>
    %50 = vector.broadcast %49 : vector<8x1xf32> to vector<8x16xf32>
    %51 = arith.addf %48, %50 : vector<8x16xf32>
    %52 = vector.extract_strided_slice %14 {offsets = [2, 0], sizes = [1, 16], strides = [1, 1]} : vector<4x16xf32> to vector<1x16xf32>
    %53 = vector.broadcast %52 : vector<1x16xf32> to vector<8x16xf32>
    %54 = arith.addf %51, %53 : vector<8x16xf32>
    %55 = vector.broadcast %5 : vector<8x1xf32> to vector<8x16xf32>
    %56 = arith.mulf %54, %55 : vector<8x16xf32>
    %57 = vector.broadcast %7 : vector<1x16xf32> to vector<8x16xf32>
    %58 = arith.mulf %56, %57 : vector<8x16xf32>
    %c0_31 = arith.constant 0 : index
    %c2 = arith.constant 2 : index
    %c0_32 = arith.constant 0 : index
    %c0_33 = arith.constant 0 : index
    %59 = vector.load %arg9[%c0_31, %c2, %c0_32, %c0_33] : memref<1x4x8x16xf32, #tpu.memory_space<vmem>>, vector<1x1x8x16xf32>
    %60 = vector.shape_cast %59 : vector<1x1x8x16xf32> to vector<8x16xf32>
    %61 = vector.shape_cast %58 : vector<8x16xf32> to vector<1x1x8x16xf32>
    tpu.vector_store %arg9[%c0_31, %c2, %c0_32, %c0_33], %61 {strides = array<i32>} : memref<1x4x8x16xf32, #tpu.memory_space<vmem>>, vector<1x1x8x16xf32>,
    %62 = vector.extract_strided_slice %16 {offsets = [0, 96], sizes = [8, 32], strides = [1, 1]} : vector<8x128xf32> to vector<8x32xf32>
    %cst_34 = arith.constant dense<0.000000e+00> : vector<8x16xf32>
    %63 = tpu.matmul %62, %3, %cst_34 {dimension_numbers = #tpu.dot_dimension_numbers<[1], [1], [0], [0], [0, 0, 1, 0], [], []>} : vector<8x32xf32>, vector<16x32xf32>, vector<8x16xf32> -> vector<8x16xf32>
    %64 = vector.extract_strided_slice %12 {offsets = [0, 3], sizes = [8, 1], strides = [1, 1]} : vector<8x4xf32> to vector<8x1xf32>
    %65 = vector.broadcast %64 : vector<8x1xf32> to vector<8x16xf32>
    %66 = arith.addf %63, %65 : vector<8x16xf32>
    %67 = vector.extract_strided_slice %14 {offsets = [3, 0], sizes = [1, 16], strides = [1, 1]} : vector<4x16xf32> to vector<1x16xf32>
    %68 = vector.broadcast %67 : vector<1x16xf32> to vector<8x16xf32>
    %69 = arith.addf %66, %68 : vector<8x16xf32>
    %70 = vector.broadcast %5 : vector<8x1xf32> to vector<8x16xf32>
    %71 = arith.mulf %69, %70 : vector<8x16xf32>
    %72 = vector.broadcast %7 : vector<1x16xf32> to vector<8x16xf32>
    %73 = arith.mulf %71, %72 : vector<8x16xf32>
    %c0_35 = arith.constant 0 : index
    %c3 = arith.constant 3 : index
    %c0_36 = arith.constant 0 : index
    %c0_37 = arith.constant 0 : index
    %74 = vector.load %arg9[%c0_35, %c3, %c0_36, %c0_37] : memref<1x4x8x16xf32, #tpu.memory_space<vmem>>, vector<1x1x8x16xf32>
    %75 = vector.shape_cast %74 : vector<1x1x8x16xf32> to vector<8x16xf32>
    %76 = vector.shape_cast %73 : vector<8x16xf32> to vector<1x1x8x16xf32>
    tpu.vector_store %arg9[%c0_35, %c3, %c0_36, %c0_37], %76 {strides = array<i32>} : memref<1x4x8x16xf32, #tpu.memory_space<vmem>>, vector<1x1x8x16xf32>,
    return
  }
  func.func @transform_0(%arg0: i32) -> (i32, i32) {
    %c0_i32 = arith.constant 0 : i32
    %c0_i32_0 = arith.constant 0 : i32
    %c0_i32_1 = arith.constant 0 : i32
    return %c0_i32, %c0_i32_0 : i32, i32
  }
  func.func @transform_1(%arg0: i32) -> (i32, i32) {
    %c0_i32 = arith.constant 0 : i32
    %c0_i32_0 = arith.constant 0 : i32
    %c0_i32_1 = arith.constant 0 : i32
    return %c0_i32, %c0_i32_0 : i32, i32
  }
  func.func @transform_2(%arg0: i32) -> (i32, i32) {
    %c0_i32 = arith.constant 0 : i32
    %c0_i32_0 = arith.constant 0 : i32
    %c0_i32_1 = arith.constant 0 : i32
    return %c0_i32, %c0_i32_0 : i32, i32
  }
  func.func @transform_3(%arg0: i32) -> (i32, i32) {
    %c0_i32 = arith.constant 0 : i32
    %c0_i32_0 = arith.constant 0 : i32
    %c0_i32_1 = arith.constant 0 : i32
    return %c0_i32, %c0_i32_0 : i32, i32
  }
  func.func @transform_4(%arg0: i32) -> (i32, i32, i32) {
    %c0_i32 = arith.constant 0 : i32
    %c0_i32_0 = arith.constant 0 : i32
    %c0_i32_1 = arith.constant 0 : i32
    return %arg0, %c0_i32, %c0_i32_0 : i32, i32, i32
  }
  func.func @transform_5(%arg0: i32) -> (i32, i32, i32) {
    %c0_i32 = arith.constant 0 : i32
    %c0_i32_0 = arith.constant 0 : i32
    %c0_i32_1 = arith.constant 0 : i32
    return %arg0, %c0_i32, %c0_i32_0 : i32, i32, i32
  }
  func.func @transform_6(%arg0: i32) -> (i32, i32, i32) {
    %c0_i32 = arith.constant 0 : i32
    %c0_i32_0 = arith.constant 0 : i32
    %c0_i32_1 = arith.constant 0 : i32
    return %arg0, %c0_i32, %c0_i32_0 : i32, i32, i32
  }
  func.func @transform_7(%arg0: i32) -> (i32, i32, i32) {
    %c0_i32 = arith.constant 0 : i32
    %c0_i32_0 = arith.constant 0 : i32
    %c0_i32_1 = arith.constant 0 : i32
    return %arg0, %c0_i32, %c0_i32_0 : i32, i32, i32
  }
  func.func @transform_8(%arg0: i32) -> (i32, i32, i32, i32) {
    %c0_i32 = arith.constant 0 : i32
    %c0_i32_0 = arith.constant 0 : i32
    %c0_i32_1 = arith.constant 0 : i32
    %c0_i32_2 = arith.constant 0 : i32
    return %arg0, %c0_i32, %c0_i32_0, %c0_i32_1 : i32, i32, i32, i32
  }
}

</mosaic_0001>

<llo_original>
// kernel: tpu_custom_call.1
$region0: #{tpu_custom_call.1}
  #allocation0 [shape = 'u32[]', space=smem, size = 0x4, offset = 0x4, fixed_abs, tag = 'smem constant byte address 0x4 - core index']
  #allocation1 [shape = 'u32[72,128]{1,0:T(1,128)}', space=vmem, size = 0x9000, scoped, tag = 'internal scratch']
  %s0 = inlined_call_operand.hbm [shape: f32[4,32], index: 0, kind: input, shape index: {}]
  %s1 = inlined_call_operand.hbm [shape: f32[4,32], index: 1, kind: input, shape index: {}]
  %s2 = inlined_call_operand.vmem [shape: f32[1,4], index: 2, kind: input, shape index: {}]
  %s3 = inlined_call_operand.hbm [shape: f32[32,128], index: 3, kind: input, shape index: {}]
  %s4 = inlined_call_operand.vmem [shape: f32[2,8,32], index: 4, kind: input, shape index: {}]
  %s5 = inlined_call_operand.hbm [shape: f32[2,16,32], index: 5, kind: input, shape index: {}]
  %s6 = inlined_call_operand.vmem [shape: f32[2,8,1], index: 6, kind: input, shape index: {}]
  %s7 = inlined_call_operand.vmem [shape: f32[2,1,16], index: 7, kind: input, shape index: {}]
  %s8 = inlined_call_operand.hbm [shape: f32[2,4,8,16], index: 8, kind: output, shape index: {}]
  %s9 = sld [smem:[#allocation0]]
  $region81: #{tpu_custom_call.1} parent=0
    _
  %s11 = ssub.s32 1, %s9
  %s12 = scalar_select 0, %s11, %s9
  $region1: #{tpu_custom_call.1} parent=0
    #allocation2 [shape = 'u8[2048]{0}', space=vmem, size = 0x800, scoped, tag = 'input window, operand 0, single buffered']
    #allocation3 [shape = 's32[2]{0}', space=sflag, size = 0x8, scoped, tag = 'scoped memory for tpu_custom_call.1']
    #allocation4 [shape = 's32[2]{0}', space=sflag, size = 0x8, scoped, tag = 'scoped memory for tpu_custom_call.1']
    #allocation5 [shape = 'u8[2048]{0}', space=vmem, size = 0x800, scoped, tag = 'input window, operand 1, single buffered']
    #allocation6 [shape = 's32[1]{0}', space=sflag, size = 0x4, scoped, tag = 'scoped memory for tpu_custom_call.1']
    #allocation7 [shape = 'u8[16384]{0}', space=vmem, size = 0x4000, scoped, tag = 'input window, operand 3, single buffered']
    #allocation8 [shape = 'u8[16384]{0}', space=vmem, size = 0x4000, scoped, tag = 'input window, operand 5']
    #allocation9 [shape = 's32[2]{0}', space=sflag, size = 0x8, scoped, tag = 'scoped memory for tpu_custom_call.1']
    #allocation10 [shape = 'u8[32768]{0}', space=vmem, size = 0x8000, scoped, tag = 'output window, operand 0']
    %13 = vsyncpa [#allocation3], 0
    %14 = vsyncpa [#allocation6], 0
    %15 = vsyncpa [#allocation9], 0
    %s16 = scalar_lea.sflag [#allocation9], 1
    %17 = vsyncpa %s16, 0
    %18 = vsyncpa [#allocation4], 0
    %s19 = scalar_lea.sflag [#allocation4], 1
    %20 = vsyncpa %s19, 0
    loop: start=0, step=1, limit=4
    $region2: #{tpu_custom_call.1} parent=1 // loop_pre_header
      _
    $region3: #{tpu_custom_call.1} parent=1 // loop_header
      %s22 = sphi 0, %s26
      %p23 = scmp.ge.s32.totalorder %s22, 4
      %s30 = sphi 0, %s30
      %s32 = sphi 0, %s30
      %s33 = sphi 0, %s32
      %s47 = sphi 0, %s33
      %s51 = sphi 0, %s51
      %s53 = sphi 0, %s51
      %s54 = sphi 0, %s53
      %s68 = sphi 0, %s54
      %s72 = sphi 0, %s72
      %s74 = sphi 0, %s72
      %s75 = sphi 0, %s74
      %s89 = sphi 0, %s75
      %s93 = sphi 0, %s93
      %s95 = sphi 0, %s93
      %s96 = sphi 0, %s95
      %s110 = sphi 0, %s96
      %s116 = sphi 0, %s118
      %s119 = sphi 0, %s116
      %s120 = sphi 0, %s119
      %s136 = sphi 0, %s120
      %s142 = sphi 0, %s144
      %s145 = sphi 0, %s142
      %s146 = sphi 0, %s145
      %s162 = sphi 0, %s146
      %s168 = sphi 0, %s170
      %s171 = sphi 0, %s168
      %s172 = sphi 0, %s171
      %s188 = sphi 0, %s172
      %s194 = sphi 0, %s196
      %s197 = sphi 0, %s194
      %s198 = sphi 0, %s197
      %s214 = sphi 0, %s198
      %s220 = sphi 0, %s222
      %s223 = sphi 0, %s220
      %s224 = sphi 0, %s223
      %s240 = sphi 0, %s224
    $region4: #{tpu_custom_call.1} parent=1 // loop_header_branch
      %25 = sbr.rel (%p23) target = $region8
    $region5: #{tpu_custom_call.1} parent=1 // loop_body
      %s27 = ssub.s32 %s22, 1
      %s28 = ssub.s32 %s22, 2
      %s29 = sadd.s32 %s22, 1
      %s31 = sadd.s32 %s30, 1
      %p34 = scmp.eq.s32.totalorder %s22, 1
      %p35 = scmp.ne.s32.totalorder %s30, %s32
      %p36 = scmp.eq.s32.totalorder %s22, 0
      %p37 = por %p35, %p36
      %p38 = scmp.ne.s32.totalorder %s30, %s32
      %p39 = scmp.eq.s32.totalorder %s27, 1
      %p40 = por %p38, %p39
      %p41 = scmp.ne.s32.totalorder %s32, %s33
      %p42 = scmp.eq.s32.totalorder %s27, 0
      %p43 = por %p41, %p42
      %p44 = scmp.ne.s32.totalorder %s32, %s33
      %p45 = scmp.eq.s32.totalorder %s28, 1
      %p46 = por %p44, %p45
      %p48 = scmp.ne.s32.totalorder %s33, %s47
      %p49 = scmp.eq.s32.totalorder %s28, 0
      %p50 = por %p48, %p49
      %s52 = sadd.s32 %s51, 1
      %p55 = scmp.eq.s32.totalorder %s22, 1
      %p56 = scmp.ne.s32.totalorder %s51, %s53
      %p57 = scmp.eq.s32.totalorder %s22, 0
      %p58 = por %p56, %p57
      %p59 = scmp.ne.s32.totalorder %s51, %s53
      %p60 = scmp.eq.s32.totalorder %s27, 1
      %p61 = por %p59, %p60
      %p62 = scmp.ne.s32.totalorder %s53, %s54
      %p63 = scmp.eq.s32.totalorder %s27, 0
      %p64 = por %p62, %p63
      %p65 = scmp.ne.s32.totalorder %s53, %s54
      %p66 = scmp.eq.s32.totalorder %s28, 1
      %p67 = por %p65, %p66
      %p69 = scmp.ne.s32.totalorder %s54, %s68
      %p70 = scmp.eq.s32.totalorder %s28, 0
      %p71 = por %p69, %p70
      %s73 = sadd.s32 %s72, 1
      %p76 = scmp.eq.s32.totalorder %s22, 1
      %p77 = scmp.ne.s32.totalorder %s72, %s74
      %p78 = scmp.eq.s32.totalorder %s22, 0
      %p79 = por %p77, %p78
      %p80 = scmp.ne.s32.totalorder %s72, %s74
      %p81 = scmp.eq.s32.totalorder %s27, 1
      %p82 = por %p80, %p81
      %p83 = scmp.ne.s32.totalorder %s74, %s75
      %p84 = scmp.eq.s32.totalorder %s27, 0
      %p85 = por %p83, %p84
      %p86 = scmp.ne.s32.totalorder %s74, %s75
      %p87 = scmp.eq.s32.totalorder %s28, 1
      %p88 = por %p86, %p87
      %p90 = scmp.ne.s32.totalorder %s75, %s89
      %p91 = scmp.eq.s32.totalorder %s28, 0
      %p92 = por %p90, %p91
      %s94 = sadd.s32 %s93, 1
      %p97 = scmp.eq.s32.totalorder %s22, 1
      %p98 = scmp.ne.s32.totalorder %s93, %s95
      %p99 = scmp.eq.s32.totalorder %s22, 0
      %p100 = por %p98, %p99
      %p101 = scmp.ne.s32.totalorder %s93, %s95
      %p102 = scmp.eq.s32.totalorder %s27, 1
      %p103 = por %p101, %p102
      %p104 = scmp.ne.s32.totalorder %s95, %s96
      %p105 = scmp.eq.s32.totalorder %s27, 0
      %p106 = por %p104, %p105
      %p107 = scmp.ne.s32.totalorder %s95, %s96
      %p108 = scmp.eq.s32.totalorder %s28, 1
      %p109 = por %p107, %p108
      %p111 = scmp.ne.s32.totalorder %s96, %s110
      %p112 = scmp.eq.s32.totalorder %s28, 0
      %p113 = por %p111, %p112
      %s114 = ssub.s32 %s22, %s29
      %p115 = scmp.eq.s32.totalorder %s114, 0
      %s117 = sadd.s32 %s116, 1
      %s118 = scalar_select %p115, %s116, %s117
      %p121 = pneg %p115
      %p122 = scmp.eq.s32.totalorder %s22, 1
      %p123 = por %p121, %p122
      %p124 = scmp.ne.s32.totalorder %s116, %s119
      %p125 = scmp.eq.s32.totalorder %s22, 0
      %p126 = por %p124, %p125
      %p127 = scmp.ne.s32.totalorder %s116, %s119
      %p128 = scmp.eq.s32.totalorder %s27, 1
      %p129 = por %p127, %p128
      %p130 = scmp.ne.s32.totalorder %s119, %s120
      %p131 = scmp.eq.s32.totalorder %s27, 0
      %p132 = por %p130, %p131
      %p133 = scmp.ne.s32.totalorder %s119, %s120
      %p134 = scmp.eq.s32.totalorder %s28, 1
      %p135 = por %p133, %p134
      %p137 = scmp.ne.s32.totalorder %s120, %s136
      %p138 = scmp.eq.s32.totalorder %s28, 0
      %p139 = por %p137, %p138
      %s140 = ssub.s32 %s22, %s29
      %p141 = scmp.eq.s32.totalorder %s140, 0
      %s143 = sadd.s32 %s142, 1
      %s144 = scalar_select %p141, %s142, %s143
      %p147 = pneg %p141
      %p148 = scmp.eq.s32.totalorder %s22, 1
      %p149 = por %p147, %p148
      %p150 = scmp.ne.s32.totalorder %s142, %s145
      %p151 = scmp.eq.s32.totalorder %s22, 0
      %p152 = por %p150, %p151
      %p153 = scmp.ne.s32.totalorder %s142, %s145
      %p154 = scmp.eq.s32.totalorder %s27, 1
      %p155 = por %p153, %p154
      %p156 = scmp.ne.s32.totalorder %s145, %s146
      %p157 = scmp.eq.s32.totalorder %s27, 0
      %p158 = por %p156, %p157
      %p159 = scmp.ne.s32.totalorder %s145, %s146
      %p160 = scmp.eq.s32.totalorder %s28, 1
      %p161 = por %p159, %p160
      %p163 = scmp.ne.s32.totalorder %s146, %s162
      %p164 = scmp.eq.s32.totalorder %s28, 0
      %p165 = por %p163, %p164
      %s166 = ssub.s32 %s22, %s29
      %p167 = scmp.eq.s32.totalorder %s166, 0
      %s169 = sadd.s32 %s168, 1
      %s170 = scalar_select %p167, %s168, %s169
      %p173 = pneg %p167
      %p174 = scmp.eq.s32.totalorder %s22, 1
      %p175 = por %p173, %p174
      %p176 = scmp.ne.s32.totalorder %s168, %s171
      %p177 = scmp.eq.s32.totalorder %s22, 0
      %p178 = por %p176, %p177
      %p179 = scmp.ne.s32.totalorder %s168, %s171
      %p180 = scmp.eq.s32.totalorder %s27, 1
      %p181 = por %p179, %p180
      %p182 = scmp.ne.s32.totalorder %s171, %s172
      %p183 = scmp.eq.s32.totalorder %s27, 0
      %p184 = por %p182, %p183
      %p185 = scmp.ne.s32.totalorder %s171, %s172
      %p186 = scmp.eq.s32.totalorder %s28, 1
      %p187 = por %p185, %p186
      %p189 = scmp.ne.s32.totalorder %s172, %s188
      %p190 = scmp.eq.s32.totalorder %s28, 0
      %p191 = por %p189, %p190
      %s192 = ssub.s32 %s22, %s29
      %p193 = scmp.eq.s32.totalorder %s192, 0
      %s195 = sadd.s32 %s194, 1
      %s196 = scalar_select %p193, %s194, %s195
      %p199 = pneg %p193
      %p200 = scmp.eq.s32.totalorder %s22, 1
      %p201 = por %p199, %p200
      %p202 = scmp.ne.s32.totalorder %s194, %s197
      %p203 = scmp.eq.s32.totalorder %s22, 0
      %p204 = por %p202, %p203
      %p205 = scmp.ne.s32.totalorder %s194, %s197
      %p206 = scmp.eq.s32.totalorder %s27, 1
      %p207 = por %p205, %p206
      %p208 = scmp.ne.s32.totalorder %s197, %s198
      %p209 = scmp.eq.s32.totalorder %s27, 0
      %p210 = por %p208, %p209
      %p211 = scmp.ne.s32.totalorder %s197, %s198
      %p212 = scmp.eq.s32.totalorder %s28, 1
      %p213 = por %p211, %p212
      %p215 = scmp.ne.s32.totalorder %s198, %s214
      %p216 = scmp.eq.s32.totalorder %s28, 0
      %p217 = por %p215, %p216
      %s218 = ssub.s32 %s22, %s29
      %p219 = scmp.eq.s32.totalorder %s218, 0
      %s221 = sadd.s32 %s220, 1
      %s222 = scalar_select %p219, %s220, %s221
      %p225 = pneg %p219
      %p226 = scmp.eq.s32.totalorder %s22, 1
      %p227 = por %p225, %p226
      %p228 = scmp.ne.s32.totalorder %s220, %s223
      %p229 = scmp.eq.s32.totalorder %s22, 0
      %p230 = por %p228, %p229
      %p231 = scmp.ne.s32.totalorder %s220, %s223
      %p232 = scmp.eq.s32.totalorder %s27, 1
      %p233 = por %p231, %p232
      %p234 = scmp.ne.s32.totalorder %s223, %s224
      %p235 = scmp.eq.s32.totalorder %s27, 0
      %p236 = por %p234, %p235
      %p237 = scmp.ne.s32.totalorder %s223, %s224
      %p238 = scmp.eq.s32.totalorder %s28, 1
      %p239 = por %p237, %p238
      %p241 = scmp.ne.s32.totalorder %s224, %s240
      %p242 = scmp.eq.s32.totalorder %s28, 0
      %p243 = por %p241, %p242
      %p244 = scmp.le.s32.totalorder 1, %s22
      %p245 = scmp.lt.s32.totalorder %s22, 3
      %p246 = pnand %p244, %p245
      %p247 = pneg %p246
      // Predicated region
      $region9: #{tpu_custom_call.1} parent=5 // pred_check
        _
      $region10: #{tpu_custom_call.1} parent=5 // pred_check_branch
        %249 = sbr.rel (%p246) target = $region12
      $region11: #{tpu_custom_call.1} parent=5 // pred_region
        %s250 = ssub.s32 %s22, 1
        // Predicated region
        $region13: #{tpu_custom_call.1} parent=11 // pred_check
          %p251 = pneg %p43
        $region14: #{tpu_custom_call.1} parent=11 // pred_check_branch
          %253 = sbr.rel (%p251) target = $region16
        $region15: #{tpu_custom_call.1} parent=11 // pred_region
          %255 = vsyncadd [#allocation3], 0
          %s257 = sshll.u32 %s0, 4
          %s258 = int_to_ptr.hbm [resolvable:$true] %s257
          %s259 = sshll.u32 [#allocation2], 4
          %s260 = int_to_ptr.vmem [resolvable:$true] %s259
          %262 = dma.hbm_to_vmem [thread:$0]  %s258, 64, %s260, [#allocation3]
        $region16: #{tpu_custom_call.1} parent=11 // pred_fallthru
          _
        // Predicated region
        $region17: #{tpu_custom_call.1} parent=11 // pred_check
          %p263 = pneg %p64
        $region18: #{tpu_custom_call.1} parent=11 // pred_check_branch
          %265 = sbr.rel (%p263) target = $region20
        $region19: #{tpu_custom_call.1} parent=11 // pred_region
          %267 = vsyncadd [#allocation6], 0
          %s269 = sshll.u32 %s1, 4
          %s270 = int_to_ptr.hbm [resolvable:$true] %s269
          %s271 = sshll.u32 [#allocation5], 4
          %s272 = int_to_ptr.vmem [resolvable:$true] %s271
          %274 = dma.hbm_to_vmem [thread:$0]  %s270, 64, %s272, [#allocation6]
        $region20: #{tpu_custom_call.1} parent=11 // pred_fallthru
          _
        // Predicated region
        $region21: #{tpu_custom_call.1} parent=11 // pred_check
          %p275 = pneg %p85
        $region22: #{tpu_custom_call.1} parent=11 // pred_check_branch
          %277 = sbr.rel (%p275) target = $region24
        $region23: #{tpu_custom_call.1} parent=11 // pred_region
          _
        $region24: #{tpu_custom_call.1} parent=11 // pred_fallthru
          _
        // Predicated region
        $region25: #{tpu_custom_call.1} parent=11 // pred_check
          %p278 = pneg %p106
        $region26: #{tpu_custom_call.1} parent=11 // pred_check_branch
          %280 = sbr.rel (%p278) target = $region28
        $region27: #{tpu_custom_call.1} parent=11 // pred_region
          %282 = vsyncadd [#allocation6], 0
          %s283 = sshll.u32 %s3, 4
          %s284 = int_to_ptr.hbm [resolvable:$true] %s283
          %s285 = sshll.u32 [#allocation7], 4
          %s286 = int_to_ptr.vmem [resolvable:$true] %s285
          %291 = dma.hbm_to_vmem [thread:$0]  %s284, 512, %s286, [#allocation6], 128, 128, 8
        $region28: #{tpu_custom_call.1} parent=11 // pred_fallthru
          _
      $region12: #{tpu_custom_call.1} parent=5 // pred_fallthru
        _
      %p292 = scmp.lt.s32.totalorder %s22, 2
      // Predicated region
      $region29: #{tpu_custom_call.1} parent=5 // pred_check
        %p293 = pneg %p292
      $region30: #{tpu_custom_call.1} parent=5 // pred_check_branch
        %295 = sbr.rel (%p293) target = $region32
      $region31: #{tpu_custom_call.1} parent=5 // pred_region
        // Predicated region
        $region33: #{tpu_custom_call.1} parent=31 // pred_check
          %p296 = pneg %p126
        $region34: #{tpu_custom_call.1} parent=31 // pred_check_branch
          %298 = sbr.rel (%p296) target = $region36
        $region35: #{tpu_custom_call.1} parent=31 // pred_region
          %p299 = scmp.lt.s32.totalorder %s22, 1
          %s300 = scalar_select %p299, %s22, 1
          %s301 = smul.addr %s300, 8
          %s302 = scalar_lea.vmem %s4, %s301
        $region36: #{tpu_custom_call.1} parent=31 // pred_fallthru
          _
        // Predicated region
        $region37: #{tpu_custom_call.1} parent=31 // pred_check
          %p303 = pneg %p152
        $region38: #{tpu_custom_call.1} parent=31 // pred_check_branch
          %305 = sbr.rel (%p303) target = $region40
        $region39: #{tpu_custom_call.1} parent=31 // pred_region
          %s306 = sand.u32 %s142, 1
          %s307 = scalar_lea.sflag [#allocation9], %s306
          %s308 = sand.u32 %s142, 1
          %s309 = smul.addr %s308, 16
          %s310 = scalar_lea.vmem [#allocation8], %s309
          %312 = vsyncadd %s307, 0
          %s313 = smul.addr %s22, 2
          %s314 = smul.addr %s313, 8
          %s315 = scalar_lea.hbm %s5, %s314
          %s316 = sshll.u32 %s315, 4
          %s317 = int_to_ptr.hbm [resolvable:$true] %s316
          %s318 = sshll.u32 %s310, 4
          %s319 = int_to_ptr.vmem [resolvable:$true] %s318
          %324 = dma.hbm_to_vmem [thread:$0]  %s317, 256, %s319, %s307, 128, 128, 8
        $region40: #{tpu_custom_call.1} parent=31 // pred_fallthru
          _
        // Predicated region
        $region41: #{tpu_custom_call.1} parent=31 // pred_check
          %p325 = pneg %p178
        $region42: #{tpu_custom_call.1} parent=31 // pred_check_branch
          %327 = sbr.rel (%p325) target = $region44
        $region43: #{tpu_custom_call.1} parent=31 // pred_region
          %p328 = scmp.lt.s32.totalorder %s22, 1
          %s329 = scalar_select %p328, %s22, 1
          %s330 = smul.addr %s329, 8
          %s331 = scalar_lea.vmem %s6, %s330
        $region44: #{tpu_custom_call.1} parent=31 // pred_fallthru
          _
        // Predicated region
        $region45: #{tpu_custom_call.1} parent=31 // pred_check
          %p332 = pneg %p204
        $region46: #{tpu_custom_call.1} parent=31 // pred_check_branch
          %334 = sbr.rel (%p332) target = $region48
        $region47: #{tpu_custom_call.1} parent=31 // pred_region
          %p335 = scmp.lt.s32.totalorder %s22, 1
          %s336 = scalar_select %p335, %s22, 1
          %s337 = scalar_lea.vmem %s7, %s336
        $region48: #{tpu_custom_call.1} parent=31 // pred_fallthru
          _
      $region32: #{tpu_custom_call.1} parent=5 // pred_fallthru
        _
      %p338 = scmp.le.s32.totalorder 1, %s22
      %p339 = scmp.lt.s32.totalorder %s22, 3
      %p340 = pnand %p338, %p339
      %p341 = pneg %p340
      // Predicated region
      $region49: #{tpu_custom_call.1} parent=5 // pred_check
        _
      $region50: #{tpu_custom_call.1} parent=5 // pred_check_branch
        %343 = sbr.rel (%p340) target = $region52
      $region51: #{tpu_custom_call.1} parent=5 // pred_region
        %s344 = ssub.s32 %s22, 1
        // Predicated region
        $region53: #{tpu_custom_call.1} parent=51 // pred_check
          %p345 = pneg %p43
        $region54: #{tpu_custom_call.1} parent=51 // pred_check_branch
          %347 = sbr.rel (%p345) target = $region56
        $region55: #{tpu_custom_call.1} parent=51 // pred_region
          %349 = dma.done [#allocation3], 64
        $region56: #{tpu_custom_call.1} parent=51 // pred_fallthru
          _
        // Predicated region
        $region57: #{tpu_custom_call.1} parent=51 // pred_check
          %p350 = pneg %p64
        $region58: #{tpu_custom_call.1} parent=51 // pred_check_branch
          %352 = sbr.rel (%p350) target = $region60
        $region59: #{tpu_custom_call.1} parent=51 // pred_region
          %354 = dma.done [#allocation6], 64
        $region60: #{tpu_custom_call.1} parent=51 // pred_fallthru
          _
        // Predicated region
        $region61: #{tpu_custom_call.1} parent=51 // pred_check
          %p355 = pneg %p106
        $region62: #{tpu_custom_call.1} parent=51 // pred_check_branch
          %357 = sbr.rel (%p355) target = $region64
        $region63: #{tpu_custom_call.1} parent=51 // pred_region
          %359 = dma.done [#allocation6], 512
        $region64: #{tpu_custom_call.1} parent=51 // pred_fallthru
          _
        %s360 = sand.u32 %s145, 1
        %s361 = scalar_lea.sflag [#allocation9], %s360
        %s362 = sand.u32 %s145, 1
        %s363 = smul.addr %s362, 16
        %s364 = scalar_lea.vmem [#allocation8], %s363
        // Predicated region
        $region65: #{tpu_custom_call.1} parent=51 // pred_check
          %p365 = pneg %p158
        $region66: #{tpu_custom_call.1} parent=51 // pred_check_branch
          %367 = sbr.rel (%p365) target = $region68
        $region67: #{tpu_custom_call.1} parent=51 // pred_region
          %369 = dma.done %s361, 256
        $region68: #{tpu_custom_call.1} parent=51 // pred_fallthru
          _
        %p370 = pneg %p43
        %p371 = pneg %p40
        %p372 = pneg %p64
        %p373 = pneg %p61
        %p374 = pneg %p85
        %p375 = pneg %p82
        %p376 = pneg %p106
        %p377 = pneg %p103
        %p378 = scmp.lt.s32.totalorder %s27, 1
        %s379 = scalar_select %p378, %s27, 1
        %s380 = smul.addr %s379, 8
        %s381 = scalar_lea.vmem %s4, %s380
        %p382 = pneg %p132
        %p383 = pneg %p129
        %s384 = sand.u32 %s145, 1
        %s385 = scalar_lea.sflag [#allocation9], %s384
        %s386 = sand.u32 %s145, 1
        %s387 = smul.addr %s386, 16
        %s388 = scalar_lea.vmem [#allocation8], %s387
        %p389 = pneg %p158
        %p390 = pneg %p155
        %p391 = scmp.lt.s32.totalorder %s27, 1
        %s392 = scalar_select %p391, %s27, 1
        %s393 = smul.addr %s392, 8
        %s394 = scalar_lea.vmem %s6, %s393
        %p395 = pneg %p184
        %p396 = pneg %p181
        %p397 = scmp.lt.s32.totalorder %s27, 1
        %s398 = scalar_select %p397, %s27, 1
        %s399 = scalar_lea.vmem %s7, %s398
        %p400 = pneg %p210
        %p401 = pneg %p207
        %p402 = pneg %p236
        %p403 = pneg %p233
        %s404 = sand.u32 %s223, 1
        %s405 = scalar_lea.sflag [#allocation4], %s404
        %s406 = sand.u32 %s223, 1
        %s407 = smul.addr %s406, 32
        %s408 = scalar_lea.vmem [#allocation10], %s407
        %p409 = scmp.lt.s32.totalorder %s27, 1
        %s410 = scalar_select %p409, %s27, 1
        %s411 = smul.addr %s410, 8
        %s412 = scalar_lea.vmem %s4, %s411
        %p413 = scmp.lt.s32.totalorder %s27, 1
        %s414 = scalar_select %p413, %s27, 1
        %s415 = smul.addr %s414, 8
        %s416 = scalar_lea.vmem %s6, %s415
        %p417 = scmp.lt.s32.totalorder %s27, 1
        %s418 = scalar_select %p417, %s27, 1
        %s419 = scalar_lea.vmem %s7, %s418
        %v420 = vld [vmem:[%s412] sm:$0xff]
        %v421 = vld [vmem:[%s364] sm:$0xff]
        %v422 = vld [vmem:[%s364 + $0x8] sm:$0xff]
        %v423 = vld [vmem:[%s416] sm:$0xff]
        %v424 = vld [vmem:[%s419] sm:$0x1]
        %v425 = vld [vmem:[#allocation2] sm:$0xf]
        %v426 = vld [vmem:[%s2] sm:$0x1]
        %v428 = vperm.slane %v426, 0
        %vm430 = vcmask 261120
        %v432 = vsel %vm430, %v420, 0
        %v435 = vsel %vm430, %v425, 0
        %437 = vmatpush.xpose.msra.mxu0 0.0
        %438 = vmatpush.xpose.msra.mxu0 0.0
        %439 = vmatpush.xpose.msra.mxu0 0.0
        %440 = vmatpush.xpose.msra.mxu0 0.0
        %441 = vmatpush.xpose.msra.mxu0 0.0
        %442 = vmatpush.xpose.msra.mxu0 0.0
        %443 = vmatpush.xpose.msra.mxu0 0.0
        %444 = vmatpush.xpose.msra.mxu0 0.0
        %445 = vmatpush.xpose.msra.mxu0 0.0
        %446 = vmatpush.xpose.msra.mxu0 0.0
        %447 = vmatpush.xpose.msra.mxu0 0.0
        %448 = vmatpush.xpose.msra.mxu0 0.0
        %449 = vmatpush.xpose.msra.mxu0 0.0
        %450 = vmatpush.xpose.msra.mxu0 0.0
        %451 = vmatpush.xpose.msra.mxu0 0.0
        %452 = vmatpush.xpose.msra.mxu0 %v435
        %453 = vmatmul.f32.gmra.mxu0 %v432
        %v454 = vpop.f32.mrf.mxu0
        %v455 = vadd.f32 %v428, %v454
        %456 = vdwg.mxu0
        %v457 = vld [vmem:[#allocation5] sm:$0xf]
        %v459 = vsel %vm430, %v457, 0
        %v462 = vsel %vm430, %v421, 0
        %v465 = vsel %vm430, %v422, 0
        %467 = vmatpush.xpose.msra.mxu0 0.0
        %468 = vmatpush.xpose.msra.mxu0 0.0
        %469 = vmatpush.xpose.msra.mxu0 0.0
        %470 = vmatpush.xpose.msra.mxu0 0.0
        %471 = vmatpush.xpose.msra.mxu0 0.0
        %472 = vmatpush.xpose.msra.mxu0 0.0
        %473 = vmatpush.xpose.msra.mxu0 0.0
        %474 = vmatpush.xpose.msra.mxu0 0.0
        %475 = vmatpush.xpose.msra.mxu0 0.0
        %476 = vmatpush.xpose.msra.mxu0 0.0
        %477 = vmatpush.xpose.msra.mxu0 0.0
        %478 = vmatpush.xpose.msra.mxu0 0.0
        %479 = vmatpush.xpose.msra.mxu0 0.0
        %480 = vmatpush.xpose.msra.mxu0 0.0
        %481 = vmatpush.xpose.msra.mxu0 %v465
        %482 = vmatpush.xpose.msra.mxu0 %v462
        %483 = vmatmul.f32.gmra.mxu0 %v459
        %v484 = vpop.f32.mrf.mxu0
        %v485 = vadd.f32 0.0, %v484
        %486 = vdwg.mxu0
        %v487 = vld [vmem:[#allocation7] sm:$0xff]
        %v488 = vld [vmem:[#allocation7 + $0x8] sm:$0xff]
        %v489 = vld [vmem:[#allocation7 + $0x10] sm:$0xff]
        %v490 = vld [vmem:[#allocation7 + $0x18] sm:$0xff]
        %491 = vmatpush.msra.mxu0 0.0
        %492 = vmatpush.msra.mxu0 0.0
        %493 = vmatpush.msra.mxu0 0.0
        %494 = vmatpush.msra.mxu0 0.0
        %495 = vmatpush.msra.mxu0 0.0
        %496 = vmatpush.msra.mxu0 0.0
        %497 = vmatpush.msra.mxu0 0.0
        %498 = vmatpush.msra.mxu0 0.0
        %499 = vmatpush.msra.mxu0 0.0
        %500 = vmatpush.msra.mxu0 0.0
        %501 = vmatpush.msra.mxu0 0.0
        %502 = vmatpush.msra.mxu0 0.0
        %503 = vmatpush.msra.mxu0 %v490
        %504 = vmatpush.msra.mxu0 %v489
        %505 = vmatpush.msra.mxu0 %v488
        %506 = vmatpush.msra.mxu0 %v487
        %507 = vmatmul.f32.gmra.mxu0 %v432
        %v508 = vpop.f32.mrf.mxu0
        %v509 = vadd.f32 0.0, %v508
        %510 = vdwg.mxu0
        %512 = vset.pattern.permute.xlu0 0
        %513 = vperm.xlu0 %512, %v455
        %v514 = vpop.permute.xlu0 %513
        %v517 = vsel %vm430, %v509, 0
        %519 = vmatpush.xpose.msra.mxu0 0.0
        %520 = vmatpush.xpose.msra.mxu0 0.0
        %521 = vmatpush.xpose.msra.mxu0 0.0
        %522 = vmatpush.xpose.msra.mxu0 0.0
        %523 = vmatpush.xpose.msra.mxu0 0.0
        %524 = vmatpush.xpose.msra.mxu0 0.0
        %525 = vmatpush.xpose.msra.mxu0 0.0
        %526 = vmatpush.xpose.msra.mxu0 0.0
        %527 = vmatpush.xpose.msra.mxu0 0.0
        %528 = vmatpush.xpose.msra.mxu0 0.0
        %529 = vmatpush.xpose.msra.mxu0 0.0
        %530 = vmatpush.xpose.msra.mxu0 0.0
        %531 = vmatpush.xpose.msra.mxu0 0.0
        %532 = vmatpush.xpose.msra.mxu0 0.0
        %533 = vmatpush.xpose.msra.mxu0 %v465
        %534 = vmatpush.xpose.msra.mxu0 %v462
        %535 = vmatmul.f32.gmra.mxu0 %v517
        %v536 = vpop.f32.mrf.mxu0
        %v537 = vadd.f32 %v514, %v536
        %538 = vdwg.mxu0
        %v539 = vperm.slane %v485, 0
        %v540 = vadd.f32 %v537, %v539
        %542 = vset.pattern.permute.xlu0 0
        %543 = vperm.xlu0 %542, %v423
        %v544 = vpop.permute.xlu0 %543
        %v546 = vmul.f32 %v540, %v544
        %v548 = vperm.slane %v424, 0
        %v550 = vmul.f32 %v546, %v548
        %vm551 = vcmask 130048
        %552 = vst.msk [vmem:[%s408] sm:$0xff] %vm551, %v550
        %553 = vset.pattern.permute.xlu0 1
        %554 = vperm.xlu0 %553, %v455
        %v555 = vpop.permute.xlu0 %554
        %557 = vrot.lane.b32.xlu0 %v509, 96
        %v558 = vpop.permute.xlu0 %557
        %v559 = vsel %vm430, %v558, 0
        %561 = vmatpush.xpose.msra.mxu0 0.0
        %562 = vmatpush.xpose.msra.mxu0 0.0
        %563 = vmatpush.xpose.msra.mxu0 0.0
        %564 = vmatpush.xpose.msra.mxu0 0.0
        %565 = vmatpush.xpose.msra.mxu0 0.0
        %566 = vmatpush.xpose.msra.mxu0 0.0
        %567 = vmatpush.xpose.msra.mxu0 0.0
        %568 = vmatpush.xpose.msra.mxu0 0.0
        %569 = vmatpush.xpose.msra.mxu0 0.0
        %570 = vmatpush.xpose.msra.mxu0 0.0
        %571 = vmatpush.xpose.msra.mxu0 0.0
        %572 = vmatpush.xpose.msra.mxu0 0.0
        %573 = vmatpush.xpose.msra.mxu0 0.0
        %574 = vmatpush.xpose.msra.mxu0 0.0
        %575 = vmatpush.xpose.msra.mxu0 %v465
        %576 = vmatpush.xpose.msra.mxu0 %v462
        %577 = vmatmul.f32.gmra.mxu0 %v559
        %v578 = vpop.f32.mrf.mxu0
        %v579 = vadd.f32 %v555, %v578
        %580 = vdwg.mxu0
        %v581 = vperm.slane %v485, 1
        %v582 = vadd.f32 %v579, %v581
        %v583 = vmul.f32 %v582, %v544
        %v584 = vmul.f32 %v583, %v548
        %s585 = scalar_lea.vmem %s408, 8 [#allocation10]
        %586 = vst.msk [vmem:[%s585] sm:$0xff] %vm551, %v584
        %587 = vset.pattern.permute.xlu0 2
        %588 = vperm.xlu0 %587, %v455
        %v589 = vpop.permute.xlu0 %588
        %591 = vrot.lane.b32.xlu0 %v509, 64
        %v592 = vpop.permute.xlu0 %591
        %v593 = vsel %vm430, %v592, 0
        %595 = vmatpush.xpose.msra.mxu0 0.0
        %596 = vmatpush.xpose.msra.mxu0 0.0
        %597 = vmatpush.xpose.msra.mxu0 0.0
        %598 = vmatpush.xpose.msra.mxu0 0.0
        %599 = vmatpush.xpose.msra.mxu0 0.0
        %600 = vmatpush.xpose.msra.mxu0 0.0
        %601 = vmatpush.xpose.msra.mxu0 0.0
        %602 = vmatpush.xpose.msra.mxu0 0.0
        %603 = vmatpush.xpose.msra.mxu0 0.0
        %604 = vmatpush.xpose.msra.mxu0 0.0
        %605 = vmatpush.xpose.msra.mxu0 0.0
        %606 = vmatpush.xpose.msra.mxu0 0.0
        %607 = vmatpush.xpose.msra.mxu0 0.0
        %608 = vmatpush.xpose.msra.mxu0 0.0
        %609 = vmatpush.xpose.msra.mxu0 %v465
        %610 = vmatpush.xpose.msra.mxu0 %v462
        %611 = vmatmul.f32.gmra.mxu0 %v593
        %v612 = vpop.f32.mrf.mxu0
        %v613 = vadd.f32 %v589, %v612
        %614 = vdwg.mxu0
        %v615 = vperm.slane %v485, 2
        %v616 = vadd.f32 %v613, %v615
        %v617 = vmul.f32 %v616, %v544
        %v618 = vmul.f32 %v617, %v548
        %s619 = scalar_lea.vmem %s408, 16 [#allocation10]
        %620 = vst.msk [vmem:[%s619] sm:$0xff] %vm551, %v618
        %621 = vset.pattern.permute.xlu0 3
        %622 = vperm.xlu0 %621, %v455
        %v623 = vpop.permute.xlu0 %622
        %625 = vrot.lane.b32.xlu0 %v509, 32
        %v626 = vpop.permute.xlu0 %625
        %v627 = vsel %vm430, %v626, 0
        %629 = vmatpush.xpose.msra.mxu0 0.0
        %630 = vmatpush.xpose.msra.mxu0 0.0
        %631 = vmatpush.xpose.msra.mxu0 0.0
        %632 = vmatpush.xpose.msra.mxu0 0.0
        %633 = vmatpush.xpose.msra.mxu0 0.0
        %634 = vmatpush.xpose.msra.mxu0 0.0
        %635 = vmatpush.xpose.msra.mxu0 0.0
        %636 = vmatpush.xpose.msra.mxu0 0.0
        %637 = vmatpush.xpose.msra.mxu0 0.0
        %638 = vmatpush.xpose.msra.mxu0 0.0
        %639 = vmatpush.xpose.msra.mxu0 0.0
        %640 = vmatpush.xpose.msra.mxu0 0.0
        %641 = vmatpush.xpose.msra.mxu0 0.0
        %642 = vmatpush.xpose.msra.mxu0 0.0
        %643 = vmatpush.xpose.msra.mxu0 %v465
        %644 = vmatpush.xpose.msra.mxu0 %v462
        %645 = vmatmul.f32.gmra.mxu0 %v627
        %v646 = vpop.f32.mrf.mxu0
        %v647 = vadd.f32 %v623, %v646
        %648 = vdwg.mxu0
        %v649 = vperm.slane %v485, 3
        %v650 = vadd.f32 %v647, %v649
        %v651 = vmul.f32 %v650, %v544
        %v652 = vmul.f32 %v651, %v548
        %s653 = scalar_lea.vmem %s408, 24 [#allocation10]
        %654 = vst.msk [vmem:[%s653] sm:$0xff] %vm551, %v652
        %s655 = sand.u32 %s223, 1
        %s656 = scalar_lea.sflag [#allocation4], %s655
        %s657 = sand.u32 %s223, 1
        %s658 = smul.addr %s657, 32
        %s659 = scalar_lea.vmem [#allocation10], %s658
        // Predicated region
        $region69: #{tpu_custom_call.1} parent=51 // pred_check
          %p660 = pneg %p233
        $region70: #{tpu_custom_call.1} parent=51 // pred_check_branch
          %662 = sbr.rel (%p660) target = $region72
        $region71: #{tpu_custom_call.1} parent=51 // pred_region
          %664 = vsyncadd %s656, 0
          %s665 = smul.addr %s27, 4
          %s666 = smul.addr %s665, 8
          %s667 = scalar_lea.hbm %s8, %s666
          %s668 = sshll.u32 %s659, 4
          %s669 = int_to_ptr.vmem [resolvable:$true] %s668
          %s670 = sshll.u32 %s667, 4
          %s671 = int_to_ptr.hbm [resolvable:$true] %s670
          %676 = dma.vmem_to_hbm [thread:$0]  %s669, 512, %s671, %s656, 128, 128, 8
        $region72: #{tpu_custom_call.1} parent=51 // pred_fallthru
          _
      $region52: #{tpu_custom_call.1} parent=5 // pred_fallthru
        _
      %p677 = scmp.le.s32.totalorder 2, %s22
      // Predicated region
      $region73: #{tpu_custom_call.1} parent=5 // pred_check
        %p678 = pneg %p677
      $region74: #{tpu_custom_call.1} parent=5 // pred_check_branch
        %680 = sbr.rel (%p678) target = $region76
      $region75: #{tpu_custom_call.1} parent=5 // pred_region
        %s681 = ssub.s32 %s22, 2
        // Predicated region
        $region77: #{tpu_custom_call.1} parent=75 // pred_check
          %p682 = pneg %p239
        $region78: #{tpu_custom_call.1} parent=75 // pred_check_branch
          %684 = sbr.rel (%p682) target = $region80
        $region79: #{tpu_custom_call.1} parent=75 // pred_region
          %s685 = sand.u32 %s224, 1
          %s686 = scalar_lea.sflag [#allocation4], %s685
          %s687 = sand.u32 %s224, 1
          %s688 = smul.addr %s687, 32
          %s689 = scalar_lea.vmem [#allocation10], %s688
          %691 = dma.done %s686, 512
        $region80: #{tpu_custom_call.1} parent=75 // pred_fallthru
          _
      $region76: #{tpu_custom_call.1} parent=5 // pred_fallthru
        _
    $region6: #{tpu_custom_call.1} parent=1 // loop_footer
      %s26 = sadd.s32 1, %s22
    $region7: #{tpu_custom_call.1} parent=1 // loop_footer_branch
      %21 = sbr.rel target = $region3
    $region8: #{tpu_custom_call.1} parent=1 // loop_exit
      _
    %692 = vsyncpa [#allocation3], 1
    %s693 = scalar_lea.sflag [#allocation3], 1
    %694 = vsyncpa %s693, 1
    %695 = vsyncpa [#allocation6], 1
    %696 = vsyncpa [#allocation9], 1
    %s697 = scalar_lea.sflag [#allocation9], 1
    %698 = vsyncpa %s697, 1
    %699 = vsyncpa [#allocation4], 1
    %s700 = scalar_lea.sflag [#allocation4], 1
    %701 = vsyncpa %s700, 1

</llo_original>
